<compile_context>
chip_gen: v5e
topology: v5e:2x2
jax: 0.10.0
libtpu: 0.0.40
codegen_flags: <defaults>
</compile_context>

<pallas_src>
import functools

import jax
import jax.numpy as jnp
from jax.experimental import pallas as pl
from jax.experimental.pallas import tpu as pltpu

POS_WEIGHT = 2.0   # pos_weight from the script
NEG_WEIGHT = 1.0   # neg_weight from the script
EPS = 1e-8

LANES = 128
MAX_TILE_ROWS = 4096   # 4096x128xf32 = 2 MiB/input tile; x2 inputs x2 bufs = 8 MiB VMEM


def _wbce_kernel(out_ref, tgt_ref, partial_ref, *,
                 pos_w, neg_w, tile_rows, n_valid):
    """One grid step: weighted BCE on a (tile_rows, 128) tile, reduced to an
    (8, 128) partial sum written to this step's own output block."""
    i = pl.program_id(0)
    last = pl.num_programs(0) - 1

    o = out_ref[...].astype(jnp.float32)
    t = tgt_ref[...].astype(jnp.float32)

    # -(pos_w * t * log(o + eps) + neg_w * (1 - t) * log(1 - o + eps))
    # TODO(synk): if targets are guaranteed {0,1} and the kernel ever becomes
    # EUP-bound, restructure to one log per element (select log(o+eps) vs
    # log(1-o+eps)); kept as two logs to match the module's semantics exactly.
    loss = -(pos_w * t * jnp.log(o + EPS)
             + neg_w * (1.0 - t) * jnp.log(1.0 - o + EPS))

    groups = tile_rows // 8   # static

    @pl.when(i < last)
    def _():
        # Steady state: every element of this tile is valid, no masking.
        partial_ref[...] = jnp.sum(loss.reshape(groups, 8, LANES), axis=0)

    @pl.when(i == last)
    def _():
        # Final block only: mask the ragged tail (lane padding from the wrapper
        # and block padding from Pallas; either may be garbage / NaN after the
        # log) so it does not pollute the mean. `rem` = number of valid
        # elements left in this block; int32 math is exact while total element
        # count < 2**31.
        rem = n_valid - i * (tile_rows * LANES)
        ridx = jax.lax.broadcasted_iota(jnp.int32, loss.shape, 0)
        cidx = jax.lax.broadcasted_iota(jnp.int32, loss.shape, 1)
        masked = jnp.where(ridx * LANES + cidx < rem, loss, 0.0)
        partial_ref[...] = jnp.sum(masked.reshape(groups, 8, LANES), axis=0)


def weighted_bce_loss(outputs, targets, pos_weight=POS_WEIGHT,
                      neg_weight=NEG_WEIGHT):
    """Mean of -(pw*t*log(o+eps) + nw*(1-t)*log(1-o+eps)) over all elements."""
    assert outputs.shape == targets.shape
    n = 1
    for d in outputs.shape:
        n *= int(d)

    o_flat = outputs.reshape(-1)
    t_flat = targets.reshape(-1)

    # Pad only the ragged tail up to a lane multiple (no copy in the common
    # case where n is already a multiple of 128). Padded slots are masked
    # inside the kernel; 0.5 just keeps log() finite there.
    pad = (-n) % LANES
    if pad:
        o_flat = jnp.pad(o_flat, (0, pad), constant_values=0.5)
        t_flat = jnp.pad(t_flat, (0, pad))

    rows = (n + pad) // LANES
    # Multiple of 16 so the sublane tiling also works for bf16/int8 inputs.
    tile_rows = min(MAX_TILE_ROWS, ((rows + 15) // 16) * 16)
    nblocks = -(-rows // tile_rows)   # cdiv

    o2d = o_flat.reshape(rows, LANES)   # row-major reshape: no data movement
    t2d = t_flat.reshape(rows, LANES)

    kernel = functools.partial(
        _wbce_kernel, pos_w=float(pos_weight), neg_w=float(neg_weight),
        tile_rows=tile_rows, n_valid=n)

    partials = pl.pallas_call(
        kernel,
        out_shape=jax.ShapeDtypeStruct((nblocks * 8, LANES), jnp.float32),
        grid=(nblocks,),
        in_specs=[
            pl.BlockSpec((tile_rows, LANES), lambda i: (i, 0)),
            pl.BlockSpec((tile_rows, LANES), lambda i: (i, 0)),
        ],
        out_specs=pl.BlockSpec((8, LANES), lambda i: (i, 0)),
        compiler_params=pltpu.CompilerParams(
            dimension_semantics=("parallel",)),
    )(o2d, t2d)

    # Tiny (~8 * nblocks * 128 element) final reduction + mean, done by XLA.
    return jnp.sum(partials) / jnp.float32(n)


if __name__ == "__main__":
    key = jax.random.PRNGKey(0)
    k1, k2 = jax.random.split(key)

    # Small NCHW-ish shapes: batch=2, channels=4, spatial=16x16.
    shape = (2, 4, 16, 16)
    # outputs are probabilities in (0, 1); targets are {0, 1}.
    outputs = jax.random.uniform(k1, shape, dtype=jnp.float32,
                                 minval=0.01, maxval=0.99)
    targets = (jax.random.uniform(k2, shape) > 0.5).astype(jnp.float32)

    loss_fn = jax.jit(weighted_bce_loss)
    loss = loss_fn(outputs, targets)
    loss = jax.block_until_ready(loss)

    # Reference check in plain JAX (same math as the PyTorch module).
    ref = jnp.mean(-(POS_WEIGHT * targets * jnp.log(outputs + EPS)
                     + NEG_WEIGHT * (1.0 - targets) * jnp.log(1.0 - outputs + EPS)))
    assert jnp.allclose(loss, ref, rtol=1e-5, atol=1e-6), (loss, ref)

    print("KERNEL_OK")
</pallas_src>

<mosaic_0001>
module attributes {stable_mosaic.version = 11 : i64} {
  func.func @_wbce_kernel(%arg0: i32, %arg1: memref<16x128xf32, #tpu.memory_space<vmem>>, %arg2: memref<16x128xf32, #tpu.memory_space<vmem>>, %arg3: memref<8x128xf32, #tpu.memory_space<vmem>>) attributes {dimension_semantics = [#tpu.dimension_semantics<parallel>], iteration_bounds = array<i64: 1>, scalar_prefetch = 0 : i64, scratch_operands = 0 : i64, tpu.core_type = #tpu.core_type<tc>, window_params = [{transform_indices = @transform_0, window_bounds = array<i64: 16, 128>}, {transform_indices = @transform_1, window_bounds = array<i64: 16, 128>}, {transform_indices = @transform_2, window_bounds = array<i64: 8, 128>}]} {
    %c0 = arith.constant 0 : index
    %c0_0 = arith.constant 0 : index
    %0 = vector.load %arg1[%c0, %c0_0] : memref<16x128xf32, #tpu.memory_space<vmem>>, vector<16x128xf32>
    %c0_1 = arith.constant 0 : index
    %c0_2 = arith.constant 0 : index
    %1 = vector.load %arg2[%c0_1, %c0_2] : memref<16x128xf32, #tpu.memory_space<vmem>>, vector<16x128xf32>
    %cst = arith.constant 2.000000e+00 : f32
    %2 = vector.broadcast %cst : f32 to vector<16x128xf32>
    %3 = arith.mulf %2, %1 : vector<16x128xf32>
    %cst_3 = arith.constant 9.99999993E-9 : f32
    %4 = vector.broadcast %cst_3 : f32 to vector<16x128xf32>
    %5 = arith.addf %0, %4 : vector<16x128xf32>
    %6 = math.log %5 : vector<16x128xf32>
    %7 = arith.mulf %3, %6 : vector<16x128xf32>
    %cst_4 = arith.constant 1.000000e+00 : f32
    %8 = vector.broadcast %cst_4 : f32 to vector<16x128xf32>
    %9 = arith.subf %8, %1 : vector<16x128xf32>
    %cst_5 = arith.constant 1.000000e+00 : f32
    %10 = vector.broadcast %cst_5 : f32 to vector<16x128xf32>
    %11 = arith.mulf %10, %9 : vector<16x128xf32>
    %cst_6 = arith.constant 1.000000e+00 : f32
    %12 = vector.broadcast %cst_6 : f32 to vector<16x128xf32>
    %13 = arith.subf %12, %0 : vector<16x128xf32>
    %cst_7 = arith.constant 9.99999993E-9 : f32
    %14 = vector.broadcast %cst_7 : f32 to vector<16x128xf32>
    %15 = arith.addf %13, %14 : vector<16x128xf32>
    %16 = math.log %15 : vector<16x128xf32>
    %17 = arith.mulf %11, %16 : vector<16x128xf32>
    %18 = arith.addf %7, %17 : vector<16x128xf32>
    %cst_8 = arith.constant 0.000000e+00 : f32
    %19 = vector.broadcast %cst_8 : f32 to vector<16x128xf32>
    %20 = arith.subf %19, %18 : vector<16x128xf32>
    %c0_i32 = arith.constant 0 : i32
    %21 = arith.cmpi slt, %arg0, %c0_i32 : i32
    %22 = arith.extui %21 : i1 to i32
    %c0_i32_9 = arith.constant 0 : i32
    %23 = arith.cmpi ne, %22, %c0_i32_9 : i32
    scf.if %23 {
      %27 = vector.shape_cast %20 : vector<16x128xf32> to vector<2x8x128xf32>
      %cst_12 = arith.constant dense<0.000000e+00> : vector<8x128xf32>
      %28 = vector.multi_reduction <add>, %27, %cst_12 [0] : vector<2x8x128xf32> to vector<8x128xf32>
      %c0_13 = arith.constant 0 : index
      %c0_14 = arith.constant 0 : index
      %29 = vector.load %arg3[%c0_13, %c0_14] : memref<8x128xf32, #tpu.memory_space<vmem>>, vector<8x128xf32>
      tpu.vector_store %arg3[%c0_13, %c0_14], %28 {strides = array<i32>} : memref<8x128xf32, #tpu.memory_space<vmem>>, vector<8x128xf32>,
    } else {
    }
    %c0_i32_10 = arith.constant 0 : i32
    %24 = arith.cmpi eq, %arg0, %c0_i32_10 : i32
    %25 = arith.extui %24 : i1 to i32
    %c0_i32_11 = arith.constant 0 : i32
    %26 = arith.cmpi ne, %25, %c0_i32_11 : i32
    scf.if %26 {
      %c2048_i32 = arith.constant 2048 : i32
      %27 = arith.muli %arg0, %c2048_i32 : i32
      %c2048_i32_12 = arith.constant 2048 : i32
      %28 = arith.subi %c2048_i32_12, %27 : i32
      %29 = tpu.iota {dimensions = array<i32: 0>} : vector<16x128xi32>
      %30 = tpu.iota {dimensions = array<i32: 1>} : vector<16x128xi32>
      %c128_i32 = arith.constant 128 : i32
      %31 = vector.broadcast %c128_i32 : i32 to vector<16x128xi32>
      %32 = arith.muli %29, %31 : vector<16x128xi32>
      %33 = arith.addi %32, %30 : vector<16x128xi32>
      %34 = vector.broadcast %28 : i32 to vector<16x128xi32>
      %35 = arith.cmpi slt, %33, %34 : vector<16x128xi32>
      %cst_13 = arith.constant 0.000000e+00 : f32
      %36 = vector.broadcast %cst_13 : f32 to vector<16x128xf32>
      %37 = arith.select %35, %20, %36 : vector<16x128xi1>, vector<16x128xf32>
      %38 = vector.shape_cast %37 : vector<16x128xf32> to vector<2x8x128xf32>
      %cst_14 = arith.constant dense<0.000000e+00> : vector<8x128xf32>
      %39 = vector.multi_reduction <add>, %38, %cst_14 [0] : vector<2x8x128xf32> to vector<8x128xf32>
      %c0_15 = arith.constant 0 : index
      %c0_16 = arith.constant 0 : index
      %40 = vector.load %arg3[%c0_15, %c0_16] : memref<8x128xf32, #tpu.memory_space<vmem>>, vector<8x128xf32>
      tpu.vector_store %arg3[%c0_15, %c0_16], %39 {strides = array<i32>} : memref<8x128xf32, #tpu.memory_space<vmem>>, vector<8x128xf32>,
    } else {
    }
    return
  }
  func.func @transform_0(%arg0: i32) -> (i32, i32) {
    %c0_i32 = arith.constant 0 : i32
    %c0_i32_0 = arith.constant 0 : i32
    return %arg0, %c0_i32 : i32, i32
  }
  func.func @transform_1(%arg0: i32) -> (i32, i32) {
    %c0_i32 = arith.constant 0 : i32
    %c0_i32_0 = arith.constant 0 : i32
    return %arg0, %c0_i32 : i32, i32
  }
  func.func @transform_2(%arg0: i32) -> (i32, i32) {
    %c0_i32 = arith.constant 0 : i32
    %c0_i32_0 = arith.constant 0 : i32
    return %arg0, %c0_i32 : i32, i32
  }
}

</mosaic_0001>

<llo_original>
// kernel: weighted_bce_loss.1
$region0: #{weighted_bce_loss.1}
  #allocation0 [shape = 'u32[]', space=smem, size = 0x4, offset = 0x4, fixed_abs, tag = 'smem constant byte address 0x4 - core index']
  #allocation1 [shape = 'u32[72,128]{1,0:T(1,128)}', space=vmem, size = 0x9000, scoped, tag = 'internal scratch']
  %s0 = inlined_call_operand.vmem [shape: f32[16,128], index: 0, kind: input, shape index: {}]
  %s1 = inlined_call_operand.vmem [shape: f32[16,128], index: 1, kind: input, shape index: {}]
  %s2 = inlined_call_operand.vmem [shape: f32[8,128], index: 2, kind: output, shape index: {}]
  %s3 = sld [smem:[#allocation0]]
  $region26: #{weighted_bce_loss.1} parent=0
    _
  %s5 = ssub.s32 1, %s3
  %s6 = scalar_select 0, %s5, %s3
  // Predicated region
  $region2: #{weighted_bce_loss.1} parent=0 // pred_check
    _
  $region3: #{weighted_bce_loss.1} parent=0 // pred_check_branch
    %8 = sbr.rel (0) target = $region5
  $region4: #{weighted_bce_loss.1} parent=0 // pred_region
    _
  $region5: #{weighted_bce_loss.1} parent=0 // pred_fallthru
    _
  // Predicated region
  $region6: #{weighted_bce_loss.1} parent=0 // pred_check
    _
  $region7: #{weighted_bce_loss.1} parent=0 // pred_check_branch
    %10 = sbr.rel (0) target = $region9
  $region8: #{weighted_bce_loss.1} parent=0 // pred_region
    _
  $region9: #{weighted_bce_loss.1} parent=0 // pred_fallthru
    _
  %v11 = vld [vmem:[%s0] sm:$0xff]
  %v12 = vld [vmem:[%s0 + $0x8] sm:$0xff]
  %v13 = vld [vmem:[%s1] sm:$0xff]
  %v14 = vld [vmem:[%s1 + $0x8] sm:$0xff]
  %v15 = vmul.f32 %v13, 2.0
  %v16 = vmul.f32 %v14, 2.0
  %v17 = vadd.f32 %v11, 1e-08
  %v18 = vadd.f32 %v12, 1e-08
  %v19 = vlog2.pop %v17
  %v20 = vmul.f32 %v19, 0.6931472
  %v21 = vlog2.pop %v18
  %v22 = vmul.f32 %v21, 0.6931472
  %v23 = vmul.f32 %v15, %v20
  %v24 = vmul.f32 %v16, %v22
  %v25 = vsub.f32 1.0, %v13
  %v26 = vsub.f32 1.0, %v14
  %v27 = vsub.f32 1.0, %v11
  %v28 = vsub.f32 1.0, %v12
  %v29 = vadd.f32 %v27, 1e-08
  %v30 = vadd.f32 %v28, 1e-08
  %v31 = vlog2.pop %v29
  %v32 = vmul.f32 %v31, 0.6931472
  %v33 = vlog2.pop %v30
  %v34 = vmul.f32 %v33, 0.6931472
  %v35 = vmul.f32 %v25, %v32
  %v36 = vmul.f32 %v26, %v34
  %v37 = vadd.f32 %v23, %v35
  %v38 = vadd.f32 %v24, %v36
  %v39 = vsub.f32 0.0, %v37
  %v40 = vsub.f32 0.0, %v38
  %p41 = scmp.lt.s32.totalorder 0, 0
  // Predicated region
  $region10: #{weighted_bce_loss.1} parent=0 // pred_check
    %p42 = pneg %p41
  $region11: #{weighted_bce_loss.1} parent=0 // pred_check_branch
    %44 = sbr.rel (%p42) target = $region13
  $region12: #{weighted_bce_loss.1} parent=0 // pred_region
    %v45 = vadd.f32 %v39, %v40
    %46 = vst [vmem:[%s2] sm:$0xff] %v45
  $region13: #{weighted_bce_loss.1} parent=0 // pred_fallthru
    _
  %p47 = scmp.eq.s32.totalorder 0, 0
  // Predicated region
  $region14: #{weighted_bce_loss.1} parent=0 // pred_check
    %p48 = pneg %p47
  $region15: #{weighted_bce_loss.1} parent=0 // pred_check_branch
    %50 = sbr.rel (%p48) target = $region17
  $region16: #{weighted_bce_loss.1} parent=0 // pred_region
    %s51 = smul.u32 0, 2048
    %s52 = ssub.s32 2048, %s51
    %v53 = vlaneseq
    %v54 = vshrl.u32 %v53, 7
    %v55 = vadd.s32 %v54, 8
    %v56 = vlaneseq
    %v57 = vand.u32 %v56, 127
    %v58 = vmul.u32 %v54, 128
    %v59 = vmul.u32 %v55, 128
    %v60 = vadd.s32 %v58, %v57
    %v61 = vadd.s32 %v59, %v57
    %v62 = vstv %s52
    %vm63 = vcmp.lt.s32.totalorder %v60, %v62
    %vm64 = vcmp.lt.s32.totalorder %v61, %v62
    %v65 = vsel %vm63, %v39, 0.0
    %v66 = vsel %vm64, %v40, 0.0
    %v67 = vadd.f32 %v65, %v66
    %68 = vst [vmem:[%s2] sm:$0xff] %v67
  $region17: #{weighted_bce_loss.1} parent=0 // pred_fallthru
    _
  // Predicated region
  $region18: #{weighted_bce_loss.1} parent=0 // pred_check
    _
  $region19: #{weighted_bce_loss.1} parent=0 // pred_check_branch
    %70 = sbr.rel (0) target = $region21
  $region20: #{weighted_bce_loss.1} parent=0 // pred_region
    _
  $region21: #{weighted_bce_loss.1} parent=0 // pred_fallthru
    _
  // Predicated region
  $region22: #{weighted_bce_loss.1} parent=0 // pred_check
    _
  $region23: #{weighted_bce_loss.1} parent=0 // pred_check_branch
    %72 = sbr.rel (0) target = $region25
  $region24: #{weighted_bce_loss.1} parent=0 // pred_region
    _
  $region25: #{weighted_bce_loss.1} parent=0 // pred_fallthru
    _

</llo_original>
